<compile_context>
chip_gen: v7x
topology: tpu7x:2x2x1
jax: 0.10.0
libtpu: 0.0.40
codegen_flags: <defaults>
</compile_context>

<pallas_src>
import jax
import jax.numpy as jnp
from jax.experimental import pallas as pl
from jax.experimental.pallas import tpu as pltpu

_LANES = 128
_SUBLANES = 8


def _round_up(n: int, m: int) -> int:
    return ((n + m - 1) // m) * m


# Packed parameter layout (17 f32 scalars, one SMEM slab):
#   params[2*j + k]  = w1[j, k]   (j in 0..3, k in 0..1)   -- layer1.weight (4, 2)
#   params[8 + j]    = b1[j]                               -- layer1.bias   (4,)
#   params[12 + j]   = w2[0, j]                            -- layer2.weight (1, 4)
#   params[16]       = b2[0]                               -- layer2.bias   (1,)
def mlp_kernel(params_ref, x_ref, o_ref):
    # x_ref: (2, TR, 128) -- two dense feature planes, batch on sublanes+lanes.
    # o_ref: (TR, 128)    -- dense output plane.
    x0 = x_ref[0]          # (TR, 128)
    x1 = x_ref[1]          # (TR, 128)

    # Hoist all SMEM scalar reads out of the unrolled hidden-unit loop.
    w1_0 = [params_ref[2 * j] for j in range(4)]      # w1[j, 0]
    w1_1 = [params_ref[2 * j + 1] for j in range(4)]  # w1[j, 1]
    b1 = [params_ref[8 + j] for j in range(4)]
    w2 = [params_ref[12 + j] for j in range(4)]
    b2 = params_ref[16]

    # Unrolled over the 4 hidden units: pure VPU multiply-add + max.
    acc = None
    for j in range(4):
        h = x0 * w1_0[j] + x1 * w1_1[j] + b1[j]
        h = jnp.maximum(h, 0.0)                        # ReLU
        term = h * w2[j]
        acc = term if acc is None else acc + term
    y = acc + b2

    o_ref[...] = y.astype(o_ref.dtype)                 # dense (8,128)-tiled store


def dummy_model_forward(x, w1, b1, w2, b2, *, rows_per_step: int = 2048):
    """Forward pass of DummyModel.

    x : (B, 2) float32   (PyTorch nn.Linear input layout)
    w1: (4, 2), b1: (4,), w2: (1, 4), b2: (1,)   (PyTorch parameter layouts)
    returns (B, 1) float32
    """
    B = int(x.shape[0])

    # --- one packed parameter slab -> single SMEM-resident input -------------
    params = jnp.concatenate(
        [w1.reshape(-1), b1.reshape(-1), w2.reshape(-1), b2.reshape(-1)]
    ).astype(jnp.float32)                              # (17,)

    # --- dense batch slab: 128 batch elems per lane-row, rows padded to 8 ----
    r0 = _round_up(max(pl.cdiv(B, _LANES), 1), _SUBLANES)      # min rows needed
    # Tile rows: big enough to amortize per-step overhead, small enough to give
    # >=2 grid steps on large inputs (v7x megacore) and fit VMEM on all gens.
    half = _round_up(pl.cdiv(r0, 2), _SUBLANES)
    tr = max(_SUBLANES, _round_up(min(rows_per_step, half), _SUBLANES))
    rows = _round_up(r0, tr)                                   # padded row count
    bp = rows * _LANES                                         # padded batch

    # Relayout (B,2) -> feature planes (2, rows, 128); one pad+transpose pass.
    xt = jnp.zeros((2, bp), jnp.float32).at[:, :B].set(x.T.astype(jnp.float32))
    xt = xt.reshape(2, rows, _LANES)

    grid = (rows // tr,)

    out = pl.pallas_call(
        mlp_kernel,
        out_shape=jax.ShapeDtypeStruct((rows, _LANES), jnp.float32),
        grid=grid,
        in_specs=[
            # all 17 parameters: one tiny DMA into SMEM, scalar-read in kernel
            pl.BlockSpec(memory_space=pltpu.MemorySpace.SMEM),
            # x tile: 2 feature planes x (tr, 128) dense batch slab
            pl.BlockSpec((2, tr, _LANES), lambda i: (0, i, 0)),
        ],
        out_specs=pl.BlockSpec((tr, _LANES), lambda i: (i, 0)),
        compiler_params=pltpu.CompilerParams(
            # batch tiles are independent -> megacore-shardable on v7x,
            # harmless no-op on single-TC v5e / v6e.
            dimension_semantics=("parallel",),
        ),
        cost_estimate=pl.CostEstimate(
            flops=28 * bp,                              # ~6 FMAs + ReLU + adds / row
            transcendentals=0,
            bytes_accessed=12 * bp + params.size * 4,   # 8 B in + 4 B out per row
        ),
    )(params, xt)

    # Padded lanes compute relu(b1)·w2 + b2 garbage; strip before returning.
    # When B is row-aligned the reshape/slice below is copy-free.
    return out.reshape(bp)[:B][:, None]


def reference_forward(x, w1, b1, w2, b2):
    """Pure-JAX reference matching the PyTorch module exactly."""
    h = jnp.maximum(x @ w1.T + b1, 0.0)
    return h @ w2.T + b2


def init_params(key):
    """Deterministic params in PyTorch layouts:
       layer1.weight (4, 2), layer1.bias (4,), layer2.weight (1, 4), layer2.bias (1,)."""
    k1, k2, k3, k4 = jax.random.split(key, 4)
    w1 = jax.random.normal(k1, (4, 2), dtype=jnp.float32) * 0.5
    b1 = jax.random.normal(k2, (4,), dtype=jnp.float32) * 0.1
    w2 = jax.random.normal(k3, (1, 4), dtype=jnp.float32) * 0.5
    b2 = jax.random.normal(k4, (1,), dtype=jnp.float32) * 0.1
    return w1, b1, w2, b2


if __name__ == "__main__":
    key = jax.random.PRNGKey(0)
    k_x, k_p = jax.random.split(key)

    batch = 8
    x = jax.random.normal(k_x, (batch, 2), dtype=jnp.float32)
    w1, b1, w2, b2 = init_params(k_p)

    out = dummy_model_forward(x, w1, b1, w2, b2)
    out = jax.block_until_ready(out)

    ref = reference_forward(x, w1, b1, w2, b2)
    assert out.shape == (batch, 1), out.shape
    assert jnp.allclose(out, ref, atol=1e-5, rtol=1e-5), (out, ref)

    print("KERNEL_OK")
</pallas_src>

<mosaic_0001>
module attributes {stable_mosaic.version = 11 : i64} {
  func.func @mlp_kernel(%arg0: i32, %arg1: memref<17xf32, #tpu.memory_space<smem>>, %arg2: memref<2x8x128xf32, #tpu.memory_space<vmem>>, %arg3: memref<8x128xf32, #tpu.memory_space<vmem>>) attributes {dimension_semantics = [#tpu.dimension_semantics<parallel>], iteration_bounds = array<i64: 1>, scalar_prefetch = 0 : i64, scratch_operands = 0 : i64, tpu.core_type = #tpu.core_type<tc>, window_params = [{transform_indices = @transform_0, window_bounds = array<i64: 17>}, {transform_indices = @transform_1, window_bounds = array<i64: 2, 8, 128>}, {transform_indices = @transform_2, window_bounds = array<i64: 8, 128>}]} {
    %c0 = arith.constant 0 : index
    %c0_0 = arith.constant 0 : index
    %c0_1 = arith.constant 0 : index
    %0 = vector.load %arg2[%c0, %c0_0, %c0_1] : memref<2x8x128xf32, #tpu.memory_space<vmem>>, vector<1x8x128xf32>
    %1 = vector.shape_cast %0 : vector<1x8x128xf32> to vector<8x128xf32>
    %c1 = arith.constant 1 : index
    %c0_2 = arith.constant 0 : index
    %c0_3 = arith.constant 0 : index
    %2 = vector.load %arg2[%c1, %c0_2, %c0_3] : memref<2x8x128xf32, #tpu.memory_space<vmem>>, vector<1x8x128xf32>
    %3 = vector.shape_cast %2 : vector<1x8x128xf32> to vector<8x128xf32>
    %c0_4 = arith.constant 0 : index
    %4 = memref.load %arg1[%c0_4] : memref<17xf32, #tpu.memory_space<smem>>
    %c2 = arith.constant 2 : index
    %5 = memref.load %arg1[%c2] : memref<17xf32, #tpu.memory_space<smem>>
    %c4 = arith.constant 4 : index
    %6 = memref.load %arg1[%c4] : memref<17xf32, #tpu.memory_space<smem>>
    %c6 = arith.constant 6 : index
    %7 = memref.load %arg1[%c6] : memref<17xf32, #tpu.memory_space<smem>>
    %c1_5 = arith.constant 1 : index
    %8 = memref.load %arg1[%c1_5] : memref<17xf32, #tpu.memory_space<smem>>
    %c3 = arith.constant 3 : index
    %9 = memref.load %arg1[%c3] : memref<17xf32, #tpu.memory_space<smem>>
    %c5 = arith.constant 5 : index
    %10 = memref.load %arg1[%c5] : memref<17xf32, #tpu.memory_space<smem>>
    %c7 = arith.constant 7 : index
    %11 = memref.load %arg1[%c7] : memref<17xf32, #tpu.memory_space<smem>>
    %c8 = arith.constant 8 : index
    %12 = memref.load %arg1[%c8] : memref<17xf32, #tpu.memory_space<smem>>
    %c9 = arith.constant 9 : index
    %13 = memref.load %arg1[%c9] : memref<17xf32, #tpu.memory_space<smem>>
    %c10 = arith.constant 10 : index
    %14 = memref.load %arg1[%c10] : memref<17xf32, #tpu.memory_space<smem>>
    %c11 = arith.constant 11 : index
    %15 = memref.load %arg1[%c11] : memref<17xf32, #tpu.memory_space<smem>>
    %c12 = arith.constant 12 : index
    %16 = memref.load %arg1[%c12] : memref<17xf32, #tpu.memory_space<smem>>
    %c13 = arith.constant 13 : index
    %17 = memref.load %arg1[%c13] : memref<17xf32, #tpu.memory_space<smem>>
    %c14 = arith.constant 14 : index
    %18 = memref.load %arg1[%c14] : memref<17xf32, #tpu.memory_space<smem>>
    %c15 = arith.constant 15 : index
    %19 = memref.load %arg1[%c15] : memref<17xf32, #tpu.memory_space<smem>>
    %c16 = arith.constant 16 : index
    %20 = memref.load %arg1[%c16] : memref<17xf32, #tpu.memory_space<smem>>
    %21 = vector.broadcast %4 : f32 to vector<8x128xf32>
    %22 = arith.mulf %1, %21 : vector<8x128xf32>
    %23 = vector.broadcast %8 : f32 to vector<8x128xf32>
    %24 = arith.mulf %3, %23 : vector<8x128xf32>
    %25 = arith.addf %22, %24 : vector<8x128xf32>
    %26 = vector.broadcast %12 : f32 to vector<8x128xf32>
    %27 = arith.addf %25, %26 : vector<8x128xf32>
    %cst = arith.constant 0.000000e+00 : f32
    %28 = vector.broadcast %cst : f32 to vector<8x128xf32>
    %29 = arith.maximumf %27, %28 : vector<8x128xf32>
    %30 = vector.broadcast %16 : f32 to vector<8x128xf32>
    %31 = arith.mulf %29, %30 : vector<8x128xf32>
    %32 = vector.broadcast %5 : f32 to vector<8x128xf32>
    %33 = arith.mulf %1, %32 : vector<8x128xf32>
    %34 = vector.broadcast %9 : f32 to vector<8x128xf32>
    %35 = arith.mulf %3, %34 : vector<8x128xf32>
    %36 = arith.addf %33, %35 : vector<8x128xf32>
    %37 = vector.broadcast %13 : f32 to vector<8x128xf32>
    %38 = arith.addf %36, %37 : vector<8x128xf32>
    %cst_6 = arith.constant 0.000000e+00 : f32
    %39 = vector.broadcast %cst_6 : f32 to vector<8x128xf32>
    %40 = arith.maximumf %38, %39 : vector<8x128xf32>
    %41 = vector.broadcast %17 : f32 to vector<8x128xf32>
    %42 = arith.mulf %40, %41 : vector<8x128xf32>
    %43 = arith.addf %31, %42 : vector<8x128xf32>
    %44 = vector.broadcast %6 : f32 to vector<8x128xf32>
    %45 = arith.mulf %1, %44 : vector<8x128xf32>
    %46 = vector.broadcast %10 : f32 to vector<8x128xf32>
    %47 = arith.mulf %3, %46 : vector<8x128xf32>
    %48 = arith.addf %45, %47 : vector<8x128xf32>
    %49 = vector.broadcast %14 : f32 to vector<8x128xf32>
    %50 = arith.addf %48, %49 : vector<8x128xf32>
    %cst_7 = arith.constant 0.000000e+00 : f32
    %51 = vector.broadcast %cst_7 : f32 to vector<8x128xf32>
    %52 = arith.maximumf %50, %51 : vector<8x128xf32>
    %53 = vector.broadcast %18 : f32 to vector<8x128xf32>
    %54 = arith.mulf %52, %53 : vector<8x128xf32>
    %55 = arith.addf %43, %54 : vector<8x128xf32>
    %56 = vector.broadcast %7 : f32 to vector<8x128xf32>
    %57 = arith.mulf %1, %56 : vector<8x128xf32>
    %58 = vector.broadcast %11 : f32 to vector<8x128xf32>
    %59 = arith.mulf %3, %58 : vector<8x128xf32>
    %60 = arith.addf %57, %59 : vector<8x128xf32>
    %61 = vector.broadcast %15 : f32 to vector<8x128xf32>
    %62 = arith.addf %60, %61 : vector<8x128xf32>
    %cst_8 = arith.constant 0.000000e+00 : f32
    %63 = vector.broadcast %cst_8 : f32 to vector<8x128xf32>
    %64 = arith.maximumf %62, %63 : vector<8x128xf32>
    %65 = vector.broadcast %19 : f32 to vector<8x128xf32>
    %66 = arith.mulf %64, %65 : vector<8x128xf32>
    %67 = arith.addf %55, %66 : vector<8x128xf32>
    %68 = vector.broadcast %20 : f32 to vector<8x128xf32>
    %69 = arith.addf %67, %68 : vector<8x128xf32>
    %c0_9 = arith.constant 0 : index
    %c0_10 = arith.constant 0 : index
    %70 = vector.load %arg3[%c0_9, %c0_10] : memref<8x128xf32, #tpu.memory_space<vmem>>, vector<8x128xf32>
    tpu.vector_store %arg3[%c0_9, %c0_10], %69 {strides = array<i32>} : memref<8x128xf32, #tpu.memory_space<vmem>>, vector<8x128xf32>,
    return
  }
  func.func @transform_0(%arg0: i32) -> i32 {
    %c0_i32 = arith.constant 0 : i32
    %c0_i32_0 = arith.constant 0 : i32
    return %c0_i32 : i32
  }
  func.func @transform_1(%arg0: i32) -> (i32, i32, i32) {
    %c0_i32 = arith.constant 0 : i32
    %c0_i32_0 = arith.constant 0 : i32
    %c0_i32_1 = arith.constant 0 : i32
    return %c0_i32, %arg0, %c0_i32_0 : i32, i32, i32
  }
  func.func @transform_2(%arg0: i32) -> (i32, i32) {
    %c0_i32 = arith.constant 0 : i32
    %c0_i32_0 = arith.constant 0 : i32
    return %arg0, %c0_i32 : i32, i32
  }
}

</mosaic_0001>

<llo_original>
// kernel: tpu_custom_call.1
$region0: #{tpu_custom_call.1}
  #allocation0 [shape = 'u32[]', space=smem, size = 0x4, offset = 0x4, fixed_abs, tag = 'smem constant byte address 0x4 - core index']
  #allocation1 [shape = 'u32[144,128]{1,0:T(1,128)}', space=vmem, size = 0x12000, scoped, tag = 'internal scratch']
  %s0 = inlined_call_operand.hbm [shape: f32[17], index: 0, kind: input, shape index: {}]
  %s1 = inlined_call_operand.hbm [shape: f32[2,8,128], index: 1, kind: input, shape index: {}]
  %s2 = inlined_call_operand.hbm [shape: f32[8,128], index: 2, kind: output, shape index: {}]
  %s3 = sld [smem:[#allocation0]]
  $region26: #{tpu_custom_call.1} parent=0
    _
  %s5 = ssub.s32 1, %s3
  %s6 = scalar_select 0, %s5, %s3
  $region1: #{tpu_custom_call.1} parent=0
    #allocation2 [shape = 'u8[512]{0}', space=smem, size = 0x200, scoped, tag = 'input window, operand 0, single buffered']
    #allocation3 [shape = 's32[1]{0}', space=sflag, size = 0x4, scoped, tag = 'scoped memory for tpu_custom_call.1']
    #allocation4 [shape = 's32[1]{0}', space=sflag, size = 0x4, scoped, tag = 'scoped memory for tpu_custom_call.1']
    #allocation5 [shape = 's32[1]{0}', space=sflag, size = 0x4, scoped, tag = 'scoped memory for tpu_custom_call.1']
    #allocation6 [shape = 'u8[8192]{0}', space=vmem, size = 0x2000, scoped, tag = 'input window, operand 1, single buffered']
    #allocation7 [shape = 'u8[4096]{0}', space=vmem, size = 0x1000, scoped, tag = 'output window, operand 0, single buffered']
    %7 = vsyncpa [#allocation5], 0
    %8 = vsyncpa [#allocation3], 0
    %9 = vsyncpa [#allocation4], 0
    // Predicated region
    $region2: #{tpu_custom_call.1} parent=1 // pred_check
      _
    $region3: #{tpu_custom_call.1} parent=1 // pred_check_branch
      %11 = sbr.rel (0) target = $region5
    $region4: #{tpu_custom_call.1} parent=1 // pred_region
      %s13 = ssub.s32 16, 16
      %14 = vsyncadd [#allocation5], %s13
      %17 = dma.hbm_to_smem %s0, 16, [#allocation2], [#allocation5]
    $region5: #{tpu_custom_call.1} parent=1 // pred_fallthru
      _
    // Predicated region
    $region6: #{tpu_custom_call.1} parent=1 // pred_check
      _
    $region7: #{tpu_custom_call.1} parent=1 // pred_check_branch
      %19 = sbr.rel (0) target = $region9
    $region8: #{tpu_custom_call.1} parent=1 // pred_region
      %s21 = ssub.s32 256, 256
      %22 = vsyncadd [#allocation3], %s21
      %s23 = sshll.u32 [#allocation6], 4
      %s24 = int_to_ptr.vmem [resolvable:$true] %s23
      %29 = dma.hbm_to_vmem [thread:$0]  %s1, 256, %s24, [#allocation3], 128, 128, 8
    $region9: #{tpu_custom_call.1} parent=1 // pred_fallthru
      _
    // Predicated region
    $region10: #{tpu_custom_call.1} parent=1 // pred_check
      _
    $region11: #{tpu_custom_call.1} parent=1 // pred_check_branch
      %31 = sbr.rel (0) target = $region13
    $region12: #{tpu_custom_call.1} parent=1 // pred_region
      %32 = dma.done [#allocation5], 16
    $region13: #{tpu_custom_call.1} parent=1 // pred_fallthru
      _
    // Predicated region
    $region14: #{tpu_custom_call.1} parent=1 // pred_check
      _
    $region15: #{tpu_custom_call.1} parent=1 // pred_check_branch
      %34 = sbr.rel (0) target = $region17
    $region16: #{tpu_custom_call.1} parent=1 // pred_region
      %35 = dma.done [#allocation3], 256
    $region17: #{tpu_custom_call.1} parent=1 // pred_fallthru
      _
    %36 = sfence
    %v37 = vld [vmem:[#allocation6] sm:$0xff]
    %s38 = scalar_lea.vmem [#allocation6], 8
    %v39 = vld [vmem:[%s38] sm:$0xff]
    %s40 = sld [smem:[#allocation2]]
    %s41 = sld [smem:[#allocation2 + $0x2]]
    %s42 = sld [smem:[#allocation2 + $0x4]]
    %s43 = sld [smem:[#allocation2 + $0x6]]
    %s44 = sld [smem:[#allocation2 + $0x1]]
    %s45 = sld [smem:[#allocation2 + $0x3]]
    %s46 = sld [smem:[#allocation2 + $0x5]]
    %s47 = sld [smem:[#allocation2 + $0x7]]
    %s48 = sld [smem:[#allocation2 + $0x8]]
    %s49 = sld [smem:[#allocation2 + $0x9]]
    %s50 = sld [smem:[#allocation2 + $0xa]]
    %s51 = sld [smem:[#allocation2 + $0xb]]
    %s52 = sld [smem:[#allocation2 + $0xc]]
    %s53 = sld [smem:[#allocation2 + $0xd]]
    %s54 = sld [smem:[#allocation2 + $0xe]]
    %s55 = sld [smem:[#allocation2 + $0xf]]
    %s56 = sld [smem:[#allocation2 + $0x10]]
    %v57 = vstv %s40
    %v58 = vmul.f32 %v37, %v57
    %v59 = vstv %s44
    %v60 = vmul.f32 %v39, %v59
    %v61 = vadd.f32 %v58, %v60
    %v62 = vstv %s48
    %v63 = vadd.f32 %v61, %v62
    %v64 = vmax.f32 %v63, 0.0
    %v65 = vstv %s52
    %v66 = vmul.f32 %v64, %v65
    %v67 = vstv %s41
    %v68 = vmul.f32 %v37, %v67
    %v69 = vstv %s45
    %v70 = vmul.f32 %v39, %v69
    %v71 = vadd.f32 %v68, %v70
    %v72 = vstv %s49
    %v73 = vadd.f32 %v71, %v72
    %v74 = vmax.f32 %v73, 0.0
    %v75 = vstv %s53
    %v76 = vmul.f32 %v74, %v75
    %v77 = vadd.f32 %v66, %v76
    %v78 = vstv %s42
    %v79 = vmul.f32 %v37, %v78
    %v80 = vstv %s46
    %v81 = vmul.f32 %v39, %v80
    %v82 = vadd.f32 %v79, %v81
    %v83 = vstv %s50
    %v84 = vadd.f32 %v82, %v83
    %v85 = vmax.f32 %v84, 0.0
    %v86 = vstv %s54
    %v87 = vmul.f32 %v85, %v86
    %v88 = vadd.f32 %v77, %v87
    %v89 = vstv %s43
    %v90 = vmul.f32 %v37, %v89
    %v91 = vstv %s47
    %v92 = vmul.f32 %v39, %v91
    %v93 = vadd.f32 %v90, %v92
    %v94 = vstv %s51
    %v95 = vadd.f32 %v93, %v94
    %v96 = vmax.f32 %v95, 0.0
    %v97 = vstv %s55
    %v98 = vmul.f32 %v96, %v97
    %v99 = vadd.f32 %v88, %v98
    %v100 = vstv %s56
    %v101 = vadd.f32 %v99, %v100
    %102 = vst [vmem:[#allocation7] sm:$0xff] %v101
    // Predicated region
    $region18: #{tpu_custom_call.1} parent=1 // pred_check
      _
    $region19: #{tpu_custom_call.1} parent=1 // pred_check_branch
      %104 = sbr.rel (0) target = $region21
    $region20: #{tpu_custom_call.1} parent=1 // pred_region
      %s106 = ssub.s32 128, 128
      %107 = vsyncadd [#allocation4], %s106
      %s109 = sshll.u32 [#allocation7], 4
      %s110 = int_to_ptr.vmem [resolvable:$true] %s109
      %112 = dma.vmem_to_hbm [thread:$0]  %s110, 128, %s2, [#allocation4]
    $region21: #{tpu_custom_call.1} parent=1 // pred_fallthru
      _
    // Predicated region
    $region22: #{tpu_custom_call.1} parent=1 // pred_check
      _
    $region23: #{tpu_custom_call.1} parent=1 // pred_check_branch
      %114 = sbr.rel (0) target = $region25
    $region24: #{tpu_custom_call.1} parent=1 // pred_region
      %115 = dma.done [#allocation4], 128
    $region25: #{tpu_custom_call.1} parent=1 // pred_fallthru
      _
    %116 = vsyncpa [#allocation3], 1
    %117 = vsyncpa [#allocation4], 1
    %118 = vsyncpa [#allocation5], 1

</llo_original>
